<compile_context>
chip_gen: v5e
topology: v5e:2x2
jax: 0.10.0
libtpu: 0.0.40
codegen_flags: <defaults>
</compile_context>

<pallas_src>
import functools

import jax
import jax.numpy as jnp
from jax.experimental import pallas as pl
from jax.experimental.pallas import tpu as pltpu

# Scoped-VMEM budget (default is 16 MiB on v5e / 32 MiB on v6e,v7x).
# TODO(synk): re-derive per generation at production shapes — v7x has only
#             64 MiB physical VMEM, so halve the K tiles there; v5e/v6e can go
#             larger with this limit raised further.
_VMEM_LIMIT_BYTES = 32 * 1024 * 1024


def _tile(dim: int, target: int) -> int:
    """Largest divisor of `dim` that is <= target (halving search)."""
    t = min(dim, target)
    while dim % t != 0:
        t //= 2
    return max(t, 1)


# ------------------------- tiled linear (MXU path) --------------------------

def _linear_kernel(x_ref, w_ref, b_ref, o_ref, acc_ref):
    # bf16 x bf16 -> f32 accumulate: native MXU rate (no HIGHEST multi-pass).
    @pl.when(pl.program_id(2) == 0)
    def _init():
        acc_ref[...] = jnp.zeros_like(acc_ref)

    acc_ref[...] += jnp.dot(x_ref[...], w_ref[...],
                            preferred_element_type=jnp.float32)

    @pl.when(pl.program_id(2) == pl.num_programs(2) - 1)
    def _finalize():
        # bias added once per output tile, only at the last K step
        o_ref[...] = (acc_ref[...]
                      + b_ref[...].astype(jnp.float32)).astype(o_ref.dtype)


def linear_pallas(x, w, b, *, tm=256, tn=256, tk=512):
    """y = x @ w + b.  x:(M,K) bf16, w:(K,N) bf16, b:(N,) f32 -> (M,N) f32."""
    M, K = x.shape
    _, N = w.shape
    tm, tn, tk = _tile(M, tm), _tile(N, tn), _tile(K, tk)
    return pl.pallas_call(
        _linear_kernel,
        out_shape=jax.ShapeDtypeStruct((M, N), jnp.float32),
        grid_spec=pltpu.PrefetchScalarGridSpec(
            num_scalar_prefetch=0,
            grid=(M // tm, N // tn, K // tk),
            in_specs=[
                pl.BlockSpec((tm, tk), lambda i, j, k: (i, k)),
                pl.BlockSpec((tk, tn), lambda i, j, k: (k, j)),
                pl.BlockSpec((1, tn), lambda i, j, k: (0, j)),
            ],
            out_specs=pl.BlockSpec((tm, tn), lambda i, j, k: (i, j)),
            scratch_shapes=[pltpu.VMEM((tm, tn), jnp.float32)],
        ),
        compiler_params=pltpu.CompilerParams(
            dimension_semantics=("parallel", "parallel", "arbitrary"),
            vmem_limit_bytes=_VMEM_LIMIT_BYTES,
        ),
    )(x, w, b.reshape(1, N))


# --------- fused PKM epilogue: gather-weighted-sum + residual + LN ----------

def _pkm_epilogue_kernel(idx_ref, wgt_ref, vals_ref, dense_ref, res_ref,
                         gamma_ref, beta_ref, o_ref, acc_ref, *, hk, eps):
    i = pl.program_id(0)          # token row
    j = pl.program_id(1)          # which of the heads*knn selected value rows

    @pl.when(j == 0)
    def _init():
        acc_ref[...] = jnp.zeros_like(acc_ref)

    # per-sample EmbeddingBag('sum') weight, scalar from SMEM
    w = wgt_ref[i * hk + j]
    acc_ref[...] += w * vals_ref[...].astype(jnp.float32)

    @pl.when(j == pl.num_programs(1) - 1)
    def _finalize():
        x = (acc_ref[...]
             + dense_ref[...].astype(jnp.float32)
             + res_ref[...].astype(jnp.float32))
        mean = jnp.mean(x, axis=-1, keepdims=True)
        cent = x - mean
        var = jnp.mean(cent * cent, axis=-1, keepdims=True)
        y = cent * jax.lax.rsqrt(var + eps)
        o_ref[...] = (y * gamma_ref[...].astype(jnp.float32)
                      + beta_ref[...].astype(jnp.float32)).astype(o_ref.dtype)


def pkm_epilogue_pallas(flat_i, flat_w, values, dense_h, residual,
                        gamma, beta, eps):
    """out = LayerNorm(sum_j w_j * values[idx_j] + dense_h + residual)."""
    M, hk = flat_i.shape
    mem_size, D = values.shape

    vals3 = values.reshape(mem_size, 1, D)
    dense3 = dense_h.reshape(M, 1, D)
    res3 = residual.reshape(M, 1, D)
    g3 = gamma.reshape(1, 1, D)
    b3 = beta.reshape(1, 1, D)
    idx_flat = flat_i.reshape(M * hk).astype(jnp.int32)
    w_flat = flat_w.reshape(M * hk).astype(jnp.float32)

    out = pl.pallas_call(
        functools.partial(_pkm_epilogue_kernel, hk=hk, eps=eps),
        out_shape=jax.ShapeDtypeStruct((M, 1, D), jnp.float32),
        grid_spec=pltpu.PrefetchScalarGridSpec(
            num_scalar_prefetch=1,                     # idx table -> SMEM
            grid=(M, hk),
            in_specs=[
                # per-sample weights, whole table in SMEM (scalar reads)
                pl.BlockSpec(memory_space=pltpu.MemorySpace.SMEM),
                # data-dependent row gather of the value table
                pl.BlockSpec((1, 1, D), lambda i, j, idx: (idx[i * hk + j], 0, 0)),
                pl.BlockSpec((1, 1, D), lambda i, j, idx: (i, 0, 0)),   # dense_h
                pl.BlockSpec((1, 1, D), lambda i, j, idx: (i, 0, 0)),   # residual
                pl.BlockSpec((1, 1, D), lambda i, j, idx: (0, 0, 0)),   # gamma
                pl.BlockSpec((1, 1, D), lambda i, j, idx: (0, 0, 0)),   # beta
            ],
            out_specs=pl.BlockSpec((1, 1, D), lambda i, j, idx: (i, 0, 0)),
            scratch_shapes=[pltpu.VMEM((1, 1, D), jnp.float32)],
        ),
        compiler_params=pltpu.CompilerParams(
            dimension_semantics=("parallel", "arbitrary"),
            vmem_limit_bytes=_VMEM_LIMIT_BYTES,
        ),
    )(idx_flat, w_flat, vals3, dense3, res3, g3, b3)
    return out.reshape(M, D)


# ----------------- product-key selection (plain JAX; top_k) -----------------
# TODO(synk): top_k has no clean Pallas/TPU primitive -> kept in plain JAX.

def pkm_select(scores2d, heads, n_keys, knn):
    M = scores2d.shape[0]
    s = scores2d.reshape(M, heads, 2, n_keys)
    s1, i1 = jax.lax.top_k(s[:, :, 0, :], knn)          # (M, heads, knn)
    s2, i2 = jax.lax.top_k(s[:, :, 1, :], knn)
    all_s = (s1[..., :, None] + s2[..., None, :]).reshape(M, heads, knn * knn)
    all_i = (i1[..., :, None] * n_keys + i2[..., None, :]).reshape(M, heads, knn * knn)
    best_s, pos = jax.lax.top_k(all_s, knn)              # (M, heads, knn)
    best_i = jnp.take_along_axis(all_i, pos, axis=-1)
    w = jax.nn.softmax(best_s.astype(jnp.float32), axis=-1)   # per head
    hk = heads * knn
    return best_i.reshape(M, hk).astype(jnp.int32), w.reshape(M, hk)


# ------------------------------ weight prep ---------------------------------

def prepare_params(raw, cfg):
    """Pre-compose query Linear with the product keys (exact), cast matmul
    weights to bf16 (MXU-native), pre-shape biases."""
    heads, k_dim, n_keys = cfg["heads"], cfg["k_dim"], cfg["n_keys"]
    half = k_dim // 2
    D_in = raw["w_q"].shape[0]

    w_q4 = raw["w_q"].reshape(D_in, heads, 2, half)
    b_q3 = raw["b_q"].reshape(heads, 2, half)
    keys = raw["keys"]                                   # (heads, 2, n_keys, half)
    w_score = jnp.einsum("dhsc,hsnc->dhsn", w_q4, keys,
                         precision=jax.lax.Precision.HIGHEST
                         ).reshape(D_in, heads * 2 * n_keys)
    b_score = jnp.einsum("hsc,hsnc->hsn", b_q3, keys,
                         precision=jax.lax.Precision.HIGHEST
                         ).reshape(heads * 2 * n_keys)

    return {
        "w_dense": raw["w_dense"].astype(jnp.bfloat16),
        "b_dense": raw["b_dense"].astype(jnp.float32),
        "w_score": w_score.astype(jnp.bfloat16),
        "b_score": b_score.astype(jnp.float32),
        "values": raw["values"].astype(jnp.float32),
        "gamma": raw["gamma"].astype(jnp.float32),
        "beta": raw["beta"].astype(jnp.float32),
    }


# ------------------------------ ResM forward --------------------------------

def resm_forward_pallas(hidden_states, input_tensor, p, cfg):
    B, S, D_in = hidden_states.shape
    D_out = input_tensor.shape[-1]
    M = B * S
    x_bf = hidden_states.reshape(M, D_in).astype(jnp.bfloat16)
    t2d = input_tensor.reshape(M, D_out).astype(jnp.float32)

    dense_h = linear_pallas(x_bf, p["w_dense"], p["b_dense"])     # dense(x)
    # dropout -> identity (eval)
    scores = linear_pallas(x_bf, p["w_score"], p["b_score"])      # PKM scores
    flat_i, flat_w = pkm_select(scores, cfg["heads"], cfg["n_keys"], cfg["knn"])
    out2d = pkm_epilogue_pallas(flat_i, flat_w, p["values"], dense_h, t2d,
                                p["gamma"], p["beta"], cfg["eps"])
    return out2d.reshape(B, S, D_out)


def resm_forward_ref(hidden_states, input_tensor, p, cfg):
    """Pure-JAX reference with identical numerics (bf16 matmul inputs, f32 acc)."""
    B, S, D_in = hidden_states.shape
    D_out = input_tensor.shape[-1]
    M = B * S
    x_bf = hidden_states.reshape(M, D_in).astype(jnp.bfloat16)
    t2d = input_tensor.reshape(M, D_out).astype(jnp.float32)

    dense_h = jnp.dot(x_bf, p["w_dense"],
                      preferred_element_type=jnp.float32) + p["b_dense"]
    scores = jnp.dot(x_bf, p["w_score"],
                     preferred_element_type=jnp.float32) + p["b_score"]
    flat_i, flat_w = pkm_select(scores, cfg["heads"], cfg["n_keys"], cfg["knn"])

    gathered = p["values"][flat_i]                       # (M, HK, D_out)
    pkm_h = jnp.sum(flat_w[..., None] * gathered, axis=1)

    x = dense_h + pkm_h + t2d
    mean = jnp.mean(x, axis=-1, keepdims=True)
    var = jnp.mean((x - mean) ** 2, axis=-1, keepdims=True)
    out = (x - mean) * jax.lax.rsqrt(var + cfg["eps"]) * p["gamma"] + p["beta"]
    return out.reshape(B, S, D_out)


# ---------------------------------- main ------------------------------------

if __name__ == "__main__":
    B, S = 2, 8
    D_in, D_out = 128, 64                    # (real module uses 3072 / 768)
    cfg = dict(heads=2, k_dim=32, n_keys=16, knn=4, eps=1e-12)
    mem_size = cfg["n_keys"] ** 2

    key = jax.random.PRNGKey(0)
    k = jax.random.split(key, 8)
    raw = {
        "w_dense": 0.02 * jax.random.normal(k[0], (D_in, D_out), jnp.float32),
        "b_dense": 0.02 * jax.random.normal(k[1], (D_out,), jnp.float32),
        "gamma": jnp.ones((D_out,), jnp.float32),
        "beta": jnp.zeros((D_out,), jnp.float32),
        "w_q": 0.02 * jax.random.normal(
            k[2], (D_in, cfg["heads"] * cfg["k_dim"]), jnp.float32),
        "b_q": 0.02 * jax.random.normal(
            k[3], (cfg["heads"] * cfg["k_dim"],), jnp.float32),
        "keys": jax.random.normal(
            k[4], (cfg["heads"], 2, cfg["n_keys"], cfg["k_dim"] // 2),
            jnp.float32) / (cfg["k_dim"] // 2) ** 0.5,
        "values": 0.02 * jax.random.normal(k[5], (mem_size, D_out), jnp.float32),
    }
    p = prepare_params(raw, cfg)

    hidden_states = jax.random.normal(k[6], (B, S, D_in), jnp.float32)
    input_tensor = jax.random.normal(k[7], (B, S, D_out), jnp.float32)

    out = jax.block_until_ready(
        resm_forward_pallas(hidden_states, input_tensor, p, cfg))
    ref = jax.block_until_ready(
        resm_forward_ref(hidden_states, input_tensor, p, cfg))

    assert out.shape == (B, S, D_out)
    assert bool(jnp.all(jnp.isfinite(out)))
    max_err = float(jnp.max(jnp.abs(out - ref)))
    assert bool(jnp.allclose(out, ref, rtol=1e-3, atol=1e-3)), max_err
    print("KERNEL_OK")
</pallas_src>

<mosaic_0001>
module attributes {stable_mosaic.version = 11 : i64} {
  func.func @_linear_kernel(%arg0: i32, %arg1: i32, %arg2: i32, %arg3: memref<16x128xbf16, #tpu.memory_space<vmem>>, %arg4: memref<128x64xbf16, #tpu.memory_space<vmem>>, %arg5: memref<1x64xf32, #tpu.memory_space<vmem>>, %arg6: memref<16x64xf32, #tpu.memory_space<vmem>>, %arg7: memref<16x64xf32, #tpu.memory_space<vmem>>) attributes {dimension_semantics = [#tpu.dimension_semantics<parallel>, #tpu.dimension_semantics<parallel>, #tpu.dimension_semantics<arbitrary>], iteration_bounds = array<i64: 1, 1, 1>, scalar_prefetch = 0 : i64, scratch_operands = 1 : i64, tpu.core_type = #tpu.core_type<tc>, window_params = [{transform_indices = @transform_0, window_bounds = array<i64: 16, 128>}, {transform_indices = @transform_1, window_bounds = array<i64: 128, 64>}, {transform_indices = @transform_2, window_bounds = array<i64: 1, 64>}, {transform_indices = @transform_3, window_bounds = array<i64: 16, 64>}]} {
    %c0_i32 = arith.constant 0 : i32
    %0 = arith.cmpi eq, %arg2, %c0_i32 : i32
    %1 = arith.extui %0 : i1 to i32
    %c0_i32_0 = arith.constant 0 : i32
    %2 = arith.cmpi ne, %1, %c0_i32_0 : i32
    scf.if %2 {
      %cst_10 = arith.constant 0.000000e+00 : f32
      %12 = vector.broadcast %cst_10 : f32 to vector<16x64xf32>
      %c0_11 = arith.constant 0 : index
      %c0_12 = arith.constant 0 : index
      %13 = vector.load %arg7[%c0_11, %c0_12] : memref<16x64xf32, #tpu.memory_space<vmem>>, vector<16x64xf32>
      tpu.vector_store %arg7[%c0_11, %c0_12], %12 {strides = array<i32>} : memref<16x64xf32, #tpu.memory_space<vmem>>, vector<16x64xf32>,
    } else {
    }
    %c0 = arith.constant 0 : index
    %c0_1 = arith.constant 0 : index
    %3 = vector.load %arg7[%c0, %c0_1] : memref<16x64xf32, #tpu.memory_space<vmem>>, vector<16x64xf32>
    %c0_2 = arith.constant 0 : index
    %c0_3 = arith.constant 0 : index
    %4 = vector.load %arg3[%c0_2, %c0_3] : memref<16x128xbf16, #tpu.memory_space<vmem>>, vector<16x128xbf16>
    %c0_4 = arith.constant 0 : index
    %c0_5 = arith.constant 0 : index
    %5 = vector.load %arg4[%c0_4, %c0_5] : memref<128x64xbf16, #tpu.memory_space<vmem>>, vector<128x64xbf16>
    %cst = arith.constant dense<0.000000e+00> : vector<16x64xf32>
    %6 = tpu.matmul %4, %5, %cst {dimension_numbers = #tpu.dot_dimension_numbers<[1], [0], [0], [1], [0, 0, 1, 1], [], []>} : vector<16x128xbf16>, vector<128x64xbf16>, vector<16x64xf32> -> vector<16x64xf32>
    %7 = arith.addf %3, %6 : vector<16x64xf32>
    %c0_6 = arith.constant 0 : index
    %c0_7 = arith.constant 0 : index
    %8 = vector.load %arg7[%c0_6, %c0_7] : memref<16x64xf32, #tpu.memory_space<vmem>>, vector<16x64xf32>
    tpu.vector_store %arg7[%c0_6, %c0_7], %7 {strides = array<i32>} : memref<16x64xf32, #tpu.memory_space<vmem>>, vector<16x64xf32>,
    %c0_i32_8 = arith.constant 0 : i32
    %9 = arith.cmpi eq, %arg2, %c0_i32_8 : i32
    %10 = arith.extui %9 : i1 to i32
    %c0_i32_9 = arith.constant 0 : i32
    %11 = arith.cmpi ne, %10, %c0_i32_9 : i32
    scf.if %11 {
      %c0_10 = arith.constant 0 : index
      %c0_11 = arith.constant 0 : index
      %12 = vector.load %arg7[%c0_10, %c0_11] : memref<16x64xf32, #tpu.memory_space<vmem>>, vector<16x64xf32>
      %c0_12 = arith.constant 0 : index
      %c0_13 = arith.constant 0 : index
      %13 = vector.load %arg5[%c0_12, %c0_13] : memref<1x64xf32, #tpu.memory_space<vmem>>, vector<1x64xf32>
      %14 = vector.broadcast %13 : vector<1x64xf32> to vector<16x64xf32>
      %15 = arith.addf %12, %14 : vector<16x64xf32>
      %c0_14 = arith.constant 0 : index
      %c0_15 = arith.constant 0 : index
      %16 = vector.load %arg6[%c0_14, %c0_15] : memref<16x64xf32, #tpu.memory_space<vmem>>, vector<16x64xf32>
      tpu.vector_store %arg6[%c0_14, %c0_15], %15 {strides = array<i32>} : memref<16x64xf32, #tpu.memory_space<vmem>>, vector<16x64xf32>,
    } else {
    }
    return
  }
  func.func @transform_0(%arg0: i32, %arg1: i32, %arg2: i32) -> (i32, i32) {
    %c0_i32 = arith.constant 0 : i32
    return %arg0, %arg2 : i32, i32
  }
  func.func @transform_1(%arg0: i32, %arg1: i32, %arg2: i32) -> (i32, i32) {
    %c0_i32 = arith.constant 0 : i32
    return %arg2, %arg1 : i32, i32
  }
  func.func @transform_2(%arg0: i32, %arg1: i32, %arg2: i32) -> (i32, i32) {
    %c0_i32 = arith.constant 0 : i32
    %c0_i32_0 = arith.constant 0 : i32
    return %c0_i32, %arg1 : i32, i32
  }
  func.func @transform_3(%arg0: i32, %arg1: i32, %arg2: i32) -> (i32, i32) {
    %c0_i32 = arith.constant 0 : i32
    return %arg0, %arg1 : i32, i32
  }
}

</mosaic_0001>

<llo_original>
// kernel: tpu_custom_call.1
$region0: #{tpu_custom_call.1}
  #allocation0 [shape = 'u32[]', space=smem, size = 0x4, offset = 0x4, fixed_abs, tag = 'smem constant byte address 0x4 - core index']
  #allocation1 [shape = 'u32[72,128]{1,0:T(1,128)}', space=vmem, size = 0x9000, scoped, tag = 'internal scratch']
  #allocation2 [shape = 'f32[16,64]{1,0:T(8,128)}', space=vmem, size = 0x2000, scoped, tag = 'scratch operand']
  %s0 = inlined_call_operand.vmem [shape: bf16[16,128], index: 0, kind: input, shape index: {}]
  %s1 = inlined_call_operand.vmem [shape: bf16[128,64], index: 1, kind: input, shape index: {}]
  %s2 = inlined_call_operand.vmem [shape: f32[1,64], index: 2, kind: input, shape index: {}]
  %s3 = inlined_call_operand.hbm [shape: f32[16,64], index: 3, kind: output, shape index: {}]
  %s4 = sld [smem:[#allocation0]]
  $region30: #{tpu_custom_call.1} parent=0
    _
  %s6 = ssub.s32 1, %s4
  %s7 = scalar_select 0, %s6, %s4
  $region1: #{tpu_custom_call.1} parent=0
    #allocation3 [shape = 'u8[8192]{0}', space=vmem, size = 0x2000, scoped, tag = 'output window, operand 0, single buffered']
    #allocation4 [shape = 's32[1]{0}', space=sflag, size = 0x4, scoped, tag = 'scoped memory for tpu_custom_call.1']
    %8 = vsyncpa [#allocation4], 0
    // Predicated region
    $region2: #{tpu_custom_call.1} parent=1 // pred_check
      _
    $region3: #{tpu_custom_call.1} parent=1 // pred_check_branch
      %10 = sbr.rel (0) target = $region5
    $region4: #{tpu_custom_call.1} parent=1 // pred_region
      _
    $region5: #{tpu_custom_call.1} parent=1 // pred_fallthru
      _
    // Predicated region
    $region6: #{tpu_custom_call.1} parent=1 // pred_check
      _
    $region7: #{tpu_custom_call.1} parent=1 // pred_check_branch
      %12 = sbr.rel (0) target = $region9
    $region8: #{tpu_custom_call.1} parent=1 // pred_region
      _
    $region9: #{tpu_custom_call.1} parent=1 // pred_fallthru
      _
    // Predicated region
    $region10: #{tpu_custom_call.1} parent=1 // pred_check
      _
    $region11: #{tpu_custom_call.1} parent=1 // pred_check_branch
      %14 = sbr.rel (0) target = $region13
    $region12: #{tpu_custom_call.1} parent=1 // pred_region
      _
    $region13: #{tpu_custom_call.1} parent=1 // pred_fallthru
      _
    %p15 = scmp.eq.s32.totalorder 0, 0
    // Predicated region
    $region14: #{tpu_custom_call.1} parent=1 // pred_check
      %p16 = pneg %p15
    $region15: #{tpu_custom_call.1} parent=1 // pred_check_branch
      %18 = sbr.rel (%p16) target = $region17
    $region16: #{tpu_custom_call.1} parent=1 // pred_region
      %vm19 = vcmask 523264
      %20 = vst.msk [vmem:[#allocation2] sm:$0xff] %vm19, 0.0
      %21 = vst.msk [vmem:[#allocation2 + $0x8] sm:$0xff] %vm19, 0.0
    $region17: #{tpu_custom_call.1} parent=1 // pred_fallthru
      _
    %v22 = vld [vmem:[#allocation2] sm:$0xff]
    %v23 = vld [vmem:[#allocation2 + $0x8] sm:$0xff]
    %v24 = vld [vmem:[%s0] sm:$0xf]
    %v25 = vld [vmem:[%s0 + $0x4] sm:$0xf]
    %v26 = vld [vmem:[%s1] sm:$0xf]
    %v27 = vld [vmem:[%s1 + $0x4] sm:$0xf]
    %v28 = vld [vmem:[%s1 + $0x8] sm:$0xf]
    %v29 = vld [vmem:[%s1 + $0xc] sm:$0xf]
    %v30 = vld [vmem:[%s1 + $0x10] sm:$0xf]
    %v31 = vld [vmem:[%s1 + $0x14] sm:$0xf]
    %v32 = vld [vmem:[%s1 + $0x18] sm:$0xf]
    %v33 = vld [vmem:[%s1 + $0x1c] sm:$0xf]
    %v34 = vld [vmem:[%s1 + $0x20] sm:$0xf]
    %v35 = vld [vmem:[%s1 + $0x24] sm:$0xf]
    %v36 = vld [vmem:[%s1 + $0x28] sm:$0xf]
    %v37 = vld [vmem:[%s1 + $0x2c] sm:$0xf]
    %v38 = vld [vmem:[%s1 + $0x30] sm:$0xf]
    %v39 = vld [vmem:[%s1 + $0x34] sm:$0xf]
    %v40 = vld [vmem:[%s1 + $0x38] sm:$0xf]
    %v41 = vld [vmem:[%s1 + $0x3c] sm:$0xf]
    %v44 = vunpack.c.l.b16 %v24
    %v45 = vunpack.c.l.b16 %v25
    %v46 = vpack.c.b16 %v45, %v44
    %v64 = vunpack.c.l.b16 %v26
    %v65 = vunpack.c.l.b16 %v27
    %v66 = vunpack.c.l.b16 %v28
    %v67 = vunpack.c.l.b16 %v29
    %v68 = vunpack.c.l.b16 %v30
    %v69 = vunpack.c.l.b16 %v31
    %v70 = vunpack.c.l.b16 %v32
    %v71 = vunpack.c.l.b16 %v33
    %v72 = vunpack.c.l.b16 %v34
    %v73 = vunpack.c.l.b16 %v35
    %v74 = vunpack.c.l.b16 %v36
    %v75 = vunpack.c.l.b16 %v37
    %v76 = vunpack.c.l.b16 %v38
    %v77 = vunpack.c.l.b16 %v39
    %v78 = vunpack.c.l.b16 %v40
    %v79 = vunpack.c.l.b16 %v41
    %v80 = vpack.c.b16 %v65, %v64
    %v81 = vpack.c.b16 %v67, %v66
    %v82 = vpack.c.b16 %v69, %v68
    %v83 = vpack.c.b16 %v71, %v70
    %v84 = vpack.c.b16 %v73, %v72
    %v85 = vpack.c.b16 %v75, %v74
    %v86 = vpack.c.b16 %v77, %v76
    %v87 = vpack.c.b16 %v79, %v78
    %96 = vmatpush.bf16.msra.mxu0 %v87
    %97 = vmatpush.bf16.msra.mxu0 %v86
    %98 = vmatpush.bf16.msra.mxu0 %v85
    %99 = vmatpush.bf16.msra.mxu0 %v84
    %100 = vmatpush.bf16.msra.mxu0 %v83
    %101 = vmatpush.bf16.msra.mxu0 %v82
    %102 = vmatpush.bf16.msra.mxu0 %v81
    %103 = vmatpush.bf16.msra.mxu0 %v80
    %104 = vmatmul.bf16.gmra.mxu0 %v46
    %v105 = vpop.f32.mrf.mxu0
    %v106 = vadd.f32 0.0, %v105
    %v107 = vpop.f32.mrf.mxu0
    %v108 = vadd.f32 0.0, %v107
    %109 = vdwg.mxu0
    %v110 = vadd.f32 %v22, %v106
    %v111 = vadd.f32 %v23, %v108
    %vm112 = vcmask 523264
    %113 = vst.msk [vmem:[#allocation2] sm:$0xff] %vm112, %v110
    %114 = vst.msk [vmem:[#allocation2 + $0x8] sm:$0xff] %vm112, %v111
    // Predicated region
    $region18: #{tpu_custom_call.1} parent=1 // pred_check
      %p115 = pneg %p15
    $region19: #{tpu_custom_call.1} parent=1 // pred_check_branch
      %117 = sbr.rel (%p115) target = $region21
    $region20: #{tpu_custom_call.1} parent=1 // pred_region
      %v118 = vld [vmem:[#allocation2] sm:$0xff]
      %v119 = vld [vmem:[#allocation2 + $0x8] sm:$0xff]
      %v120 = vld [vmem:[%s2] sm:$0x1]
      %v122 = vperm.slane %v120, 0
      %v124 = vadd.f32 %v118, %v122
      %v125 = vadd.f32 %v119, %v122
      %126 = vst.msk [vmem:[#allocation3] sm:$0xff] %vm112, %v124
      %127 = vst.msk [vmem:[#allocation3 + $0x8] sm:$0xff] %vm112, %v125
    $region21: #{tpu_custom_call.1} parent=1 // pred_fallthru
      _
    // Predicated region
    $region22: #{tpu_custom_call.1} parent=1 // pred_check
      _
    $region23: #{tpu_custom_call.1} parent=1 // pred_check_branch
      %129 = sbr.rel (0) target = $region25
    $region24: #{tpu_custom_call.1} parent=1 // pred_region
      %131 = vsyncadd [#allocation4], 0
      %s132 = sshll.u32 [#allocation3], 4
      %s133 = int_to_ptr.vmem [resolvable:$true] %s132
      %s134 = sshll.u32 %s3, 4
      %s135 = int_to_ptr.hbm [resolvable:$true] %s134
      %140 = dma.vmem_to_hbm [thread:$0]  %s133, 256, %s135, [#allocation4], 128, 128, 8
    $region25: #{tpu_custom_call.1} parent=1 // pred_fallthru
      _
    // Predicated region
    $region26: #{tpu_custom_call.1} parent=1 // pred_check
      _
    $region27: #{tpu_custom_call.1} parent=1 // pred_check_branch
      %142 = sbr.rel (0) target = $region29
    $region28: #{tpu_custom_call.1} parent=1 // pred_region
      %144 = dma.done [#allocation4], 256
    $region29: #{tpu_custom_call.1} parent=1 // pred_fallthru
      _
    %145 = vsyncpa [#allocation4], 1

</llo_original>
